<compile_context>
chip_gen: v6e
topology: v6e:2x2x1
jax: 0.10.0
libtpu: 0.0.40
codegen_flags: <defaults>
</compile_context>

<pallas_src>
import math
from functools import partial

import jax
import jax.numpy as jnp
from jax.experimental import pallas as pl
from jax.experimental.pallas import tpu as pltpu

# Below this many output bytes a pallas_call cannot beat a fused XLA expression
# (launch + ~0.35 us/step fixed overhead dominates).
_PALLAS_MIN_OUT_BYTES = 256 * 1024


def _round_up(v: int, m: int) -> int:
    return ((v + m - 1) // m) * m


def _sinusoidal_kernel(x_ref, freqs_ref, out_ref, *, half_dim: int, scale: float):
    # x_ref:    (TB, 1)        f32   (timestep column tile)
    # freqs_ref:(1, half_dim)  f32   (shared frequency row, constant across grid)
    # out_ref:  (TB, 2*half_dim) out_dtype
    # Same multiply order as the reference: (scale * x) * freqs  -> (TB, half_dim).
    arg = (scale * x_ref[...]) * freqs_ref[...]
    # Two static slice stores instead of a concatenate. With half_dim % 128 == 0
    # (enforced by the wrapper's Pallas-path dispatch) both stores are
    # lane-aligned, full-width, unmasked vst — no VMEM temp, no lane relayout.
    out_ref[:, :half_dim] = jnp.sin(arg).astype(out_ref.dtype)
    out_ref[:, half_dim:] = jnp.cos(arg).astype(out_ref.dtype)


def _xla_fallback(x, freqs, scale, out_dtype):
    emb = (scale * x.astype(jnp.float32)[:, None]) * freqs  # (B, half_dim)
    return jnp.concatenate((jnp.sin(emb), jnp.cos(emb)), axis=-1).astype(out_dtype)


def sinusoidal_pos_emb(x: jax.Array, dim: int, scale: float = 1000.0, *,
                       out_dtype=jnp.float32, block_rows: int | None = None,
                       force_pallas: bool | None = None) -> jax.Array:
    """x: (B,) float -> (B, dim) sinusoidal embedding (gradtts convention)."""
    assert dim % 2 == 0 and dim >= 4, "dim must be even and >= 4 (half_dim-1 > 0)"
    half_dim = dim // 2
    b = x.shape[0]

    # Frequencies computed once outside the kernel (EUP exp hoisted out of the
    # per-row inner loop; identical values for kernel and fallback paths).
    coef = -math.log(10000.0) / (half_dim - 1)
    freqs = jnp.exp(jnp.arange(half_dim, dtype=jnp.float32) * coef).reshape(1, half_dim)

    out_item = jnp.dtype(out_dtype).itemsize
    out_bytes = b * dim * out_item
    lane_aligned = (half_dim % 128 == 0)

    use_pallas = lane_aligned and out_bytes >= _PALLAS_MIN_OUT_BYTES
    if force_pallas is not None:
        use_pallas = force_pallas
    if not use_pallas:
        # Fused XLA expression: strictly faster for small launches and avoids
        # masked partial stores when the sin/cos boundary is not lane-aligned.
        return _xla_fallback(x, freqs, scale, out_dtype)

    # --- Row-tile size: chosen by bytes, not rows. -------------------------
    row_bytes = dim * out_item
    target_tile_bytes = 4 << 20    # ~4 MiB of output per grid step
    vmem_budget = 24 << 20         # headroom under v7x's 32 MiB scoped default
    tb = max(1, target_tile_bytes // row_bytes)
    tb = min(tb, max(1, vmem_budget // (2 * row_bytes)))   # double-buffered out
    if block_rows is not None:
        tb = min(tb, block_rows)
    tb = min(tb, _round_up(b, 8))
    tb = max(8, (tb // 8) * 8)     # sublane multiple

    x2d = x.astype(jnp.float32).reshape(b, 1)   # no padding; Pallas masks the tail

    kernel = partial(_sinusoidal_kernel, half_dim=half_dim, scale=float(scale))
    return pl.pallas_call(
        kernel,
        out_shape=jax.ShapeDtypeStruct((b, dim), out_dtype),
        grid=(pl.cdiv(b, tb),),
        in_specs=[
            pl.BlockSpec((tb, 1), lambda i: (i, 0)),          # timestep row tile
            pl.BlockSpec((1, half_dim), lambda i: (0, 0)),    # shared freq row
        ],
        out_specs=pl.BlockSpec((tb, dim), lambda i: (i, 0)),
        compiler_params=pltpu.CompilerParams(
            dimension_semantics=("parallel",),
        ),
    )(x2d, freqs)


def _reference(x, dim, scale=1000.0):
    half_dim = dim // 2
    emb = math.log(10000.0) / (half_dim - 1)
    emb = jnp.exp(jnp.arange(half_dim, dtype=jnp.float32) * -emb)
    emb = scale * x.astype(jnp.float32)[:, None] * emb[None, :]
    return jnp.concatenate((jnp.sin(emb), jnp.cos(emb)), axis=-1)


if __name__ == "__main__":
    key = jax.random.PRNGKey(0)
    k1, k2 = jax.random.split(key)

    # Case 1: typical small diffusion-time shape -> fused XLA fallback path.
    b1, dim1 = 8, 32
    x1 = jax.random.uniform(k1, (b1,), dtype=jnp.float32)   # timesteps in [0, 1)
    out1 = jax.block_until_ready(sinusoidal_pos_emb(x1, dim1, scale=1000.0))
    ref1 = _reference(x1, dim1, scale=1000.0)
    assert out1.shape == (b1, dim1), out1.shape
    assert jnp.allclose(out1, ref1, atol=1e-5, rtol=1e-5), \
        float(jnp.max(jnp.abs(out1 - ref1)))

    # Case 2: Pallas path — lane-aligned dim (half_dim % 128 == 0), ragged batch
    # (B not a multiple of the 32-row tile) to exercise the masked boundary block
    # with no wrapper pad / output slice, and a multi-step parallel grid.
    b2, dim2 = 70, 256
    x2 = jax.random.uniform(k2, (b2,), dtype=jnp.float32)
    out2 = jax.block_until_ready(
        sinusoidal_pos_emb(x2, dim2, scale=1000.0, block_rows=32, force_pallas=True))
    ref2 = _reference(x2, dim2, scale=1000.0)
    assert out2.shape == (b2, dim2), out2.shape
    assert jnp.allclose(out2, ref2, atol=1e-5, rtol=1e-5), \
        float(jnp.max(jnp.abs(out2 - ref2)))

    print("KERNEL_OK")
</pallas_src>

<mosaic_0001>
module attributes {stable_mosaic.version = 11 : i64} {
  func.func @_sinusoidal_kernel(%arg0: i32, %arg1: memref<32x1xf32, #tpu.memory_space<vmem>>, %arg2: memref<1x128xf32, #tpu.memory_space<vmem>>, %arg3: memref<32x256xf32, #tpu.memory_space<vmem>>) attributes {dimension_semantics = [#tpu.dimension_semantics<parallel>], iteration_bounds = array<i64: 3>, scalar_prefetch = 0 : i64, scratch_operands = 0 : i64, tpu.core_type = #tpu.core_type<tc>, window_params = [{transform_indices = @transform_0, window_bounds = array<i64: 32, 1>}, {pipeline_mode = #tpu.pipeline_mode<synchronous>, transform_indices = @transform_1, window_bounds = array<i64: 1, 128>}, {transform_indices = @transform_2, window_bounds = array<i64: 32, 256>}]} {
    %c0 = arith.constant 0 : index
    %c0_0 = arith.constant 0 : index
    %0 = vector.load %arg1[%c0, %c0_0] : memref<32x1xf32, #tpu.memory_space<vmem>>, vector<32x1xf32>
    %cst = arith.constant 1.000000e+03 : f32
    %1 = vector.broadcast %cst : f32 to vector<32x1xf32>
    %2 = arith.mulf %1, %0 : vector<32x1xf32>
    %c0_1 = arith.constant 0 : index
    %c0_2 = arith.constant 0 : index
    %3 = vector.load %arg2[%c0_1, %c0_2] : memref<1x128xf32, #tpu.memory_space<vmem>>, vector<1x128xf32>
    %4 = vector.broadcast %2 : vector<32x1xf32> to vector<32x128xf32>
    %5 = vector.broadcast %3 : vector<1x128xf32> to vector<32x128xf32>
    %6 = arith.mulf %4, %5 : vector<32x128xf32>
    %7 = math.sin %6 : vector<32x128xf32>
    %c0_3 = arith.constant 0 : index
    %c0_4 = arith.constant 0 : index
    %8 = vector.load %arg3[%c0_3, %c0_4] : memref<32x256xf32, #tpu.memory_space<vmem>>, vector<32x128xf32>
    tpu.vector_store %arg3[%c0_3, %c0_4], %7 {strides = array<i32>} : memref<32x256xf32, #tpu.memory_space<vmem>>, vector<32x128xf32>,
    %9 = math.cos %6 : vector<32x128xf32>
    %c0_5 = arith.constant 0 : index
    %c128 = arith.constant 128 : index
    %10 = vector.load %arg3[%c0_5, %c128] : memref<32x256xf32, #tpu.memory_space<vmem>>, vector<32x128xf32>
    tpu.vector_store %arg3[%c0_5, %c128], %9 {strides = array<i32>} : memref<32x256xf32, #tpu.memory_space<vmem>>, vector<32x128xf32>,
    return
  }
  func.func @transform_0(%arg0: i32) -> (i32, i32) {
    %c0_i32 = arith.constant 0 : i32
    %c0_i32_0 = arith.constant 0 : i32
    return %arg0, %c0_i32 : i32, i32
  }
  func.func @transform_1(%arg0: i32) -> (i32, i32) {
    %c0_i32 = arith.constant 0 : i32
    %c0_i32_0 = arith.constant 0 : i32
    %c0_i32_1 = arith.constant 0 : i32
    return %c0_i32, %c0_i32_0 : i32, i32
  }
  func.func @transform_2(%arg0: i32) -> (i32, i32) {
    %c0_i32 = arith.constant 0 : i32
    %c0_i32_0 = arith.constant 0 : i32
    return %arg0, %c0_i32 : i32, i32
  }
}

</mosaic_0001>

<llo_original>
// kernel: tpu_custom_call.1
$region0: #{tpu_custom_call.1}
  #allocation0 [shape = 'u32[]', space=smem, size = 0x4, offset = 0x4, fixed_abs, tag = 'smem constant byte address 0x4 - core index']
  #allocation1 [shape = 'u32[144,128]{1,0:T(1,128)}', space=vmem, size = 0x12000, scoped, tag = 'internal scratch']
  %s0 = inlined_call_operand.vmem [shape: f32[70,1], index: 0, kind: input, shape index: {}]
  %s1 = inlined_call_operand.vmem [shape: f32[1,128], index: 1, kind: input, shape index: {}]
  %s2 = inlined_call_operand.hbm [shape: f32[70,256], index: 2, kind: output, shape index: {}]
  %s3 = sld [smem:[#allocation0]]
  $region41: #{tpu_custom_call.1} parent=0
    _
  %s5 = ssub.s32 1, %s3
  %s6 = scalar_select 0, %s5, %s3
  $region1: #{tpu_custom_call.1} parent=0
    #allocation2 [shape = 'u8[65536]{0}', space=vmem, size = 0x10000, scoped, tag = 'output window, operand 0']
    #allocation3 [shape = 's32[2]{0}', space=sflag, size = 0x8, scoped, tag = 'scoped memory for tpu_custom_call.1']
    %7 = vsyncpa [#allocation3], 0
    %s8 = scalar_lea.sflag [#allocation3], 1
    %9 = vsyncpa %s8, 0
    loop: start=0, step=1, limit=5
    $region2: #{tpu_custom_call.1} parent=1 // loop_pre_header
      _
    $region3: #{tpu_custom_call.1} parent=1 // loop_header
      %s11 = sphi 0, %s15
      %p12 = scmp.ge.s32.totalorder %s11, 5
      %s21 = sphi 0, %s23
      %s24 = sphi 0, %s21
      %s25 = sphi 0, %s24
      %s41 = sphi 0, %s25
      %s45 = sphi 0, %s45
      %s47 = sphi 0, %s45
      %s48 = sphi 0, %s47
      %s62 = sphi 0, %s48
      %s68 = sphi 0, %s70
      %s71 = sphi 0, %s68
      %s72 = sphi 0, %s71
      %s88 = sphi 0, %s72
    $region4: #{tpu_custom_call.1} parent=1 // loop_header_branch
      %14 = sbr.rel (%p12) target = $region8
    $region5: #{tpu_custom_call.1} parent=1 // loop_body
      %s16 = ssub.s32 %s11, 1
      %s17 = ssub.s32 %s11, 2
      %s18 = sadd.s32 %s11, 1
      %s19 = ssub.s32 %s11, %s18
      %p20 = scmp.eq.s32.totalorder %s19, 0
      %s22 = sadd.s32 %s21, 1
      %s23 = scalar_select %p20, %s21, %s22
      %p26 = pneg %p20
      %p27 = scmp.eq.s32.totalorder %s11, 2
      %p28 = por %p26, %p27
      %p29 = scmp.ne.s32.totalorder %s21, %s24
      %p30 = scmp.eq.s32.totalorder %s11, 0
      %p31 = por %p29, %p30
      %p32 = scmp.ne.s32.totalorder %s21, %s24
      %p33 = scmp.eq.s32.totalorder %s16, 2
      %p34 = por %p32, %p33
      %p35 = scmp.ne.s32.totalorder %s24, %s25
      %p36 = scmp.eq.s32.totalorder %s16, 0
      %p37 = por %p35, %p36
      %p38 = scmp.ne.s32.totalorder %s24, %s25
      %p39 = scmp.eq.s32.totalorder %s17, 2
      %p40 = por %p38, %p39
      %p42 = scmp.ne.s32.totalorder %s25, %s41
      %p43 = scmp.eq.s32.totalorder %s17, 0
      %p44 = por %p42, %p43
      %s46 = sadd.s32 %s45, 1
      %p49 = scmp.eq.s32.totalorder %s11, 2
      %p50 = scmp.ne.s32.totalorder %s45, %s47
      %p51 = scmp.eq.s32.totalorder %s11, 0
      %p52 = por %p50, %p51
      %p53 = scmp.ne.s32.totalorder %s45, %s47
      %p54 = scmp.eq.s32.totalorder %s16, 2
      %p55 = por %p53, %p54
      %p56 = scmp.ne.s32.totalorder %s47, %s48
      %p57 = scmp.eq.s32.totalorder %s16, 0
      %p58 = por %p56, %p57
      %p59 = scmp.ne.s32.totalorder %s47, %s48
      %p60 = scmp.eq.s32.totalorder %s17, 2
      %p61 = por %p59, %p60
      %p63 = scmp.ne.s32.totalorder %s48, %s62
      %p64 = scmp.eq.s32.totalorder %s17, 0
      %p65 = por %p63, %p64
      %s66 = ssub.s32 %s11, %s18
      %p67 = scmp.eq.s32.totalorder %s66, 0
      %s69 = sadd.s32 %s68, 1
      %s70 = scalar_select %p67, %s68, %s69
      %p73 = pneg %p67
      %p74 = scmp.eq.s32.totalorder %s11, 2
      %p75 = por %p73, %p74
      %p76 = scmp.ne.s32.totalorder %s68, %s71
      %p77 = scmp.eq.s32.totalorder %s11, 0
      %p78 = por %p76, %p77
      %p79 = scmp.ne.s32.totalorder %s68, %s71
      %p80 = scmp.eq.s32.totalorder %s16, 2
      %p81 = por %p79, %p80
      %p82 = scmp.ne.s32.totalorder %s71, %s72
      %p83 = scmp.eq.s32.totalorder %s16, 0
      %p84 = por %p82, %p83
      %p85 = scmp.ne.s32.totalorder %s71, %s72
      %p86 = scmp.eq.s32.totalorder %s17, 2
      %p87 = por %p85, %p86
      %p89 = scmp.ne.s32.totalorder %s72, %s88
      %p90 = scmp.eq.s32.totalorder %s17, 0
      %p91 = por %p89, %p90
      %p92 = scmp.le.s32.totalorder 1, %s11
      %p93 = scmp.lt.s32.totalorder %s11, 4
      %p94 = pnand %p92, %p93
      %p95 = pneg %p94
      // Predicated region
      $region9: #{tpu_custom_call.1} parent=5 // pred_check
        _
      $region10: #{tpu_custom_call.1} parent=5 // pred_check_branch
        %97 = sbr.rel (%p94) target = $region12
      $region11: #{tpu_custom_call.1} parent=5 // pred_region
        %s98 = ssub.s32 %s11, 1
        // Predicated region
        $region13: #{tpu_custom_call.1} parent=11 // pred_check
          %p99 = pneg %p58
        $region14: #{tpu_custom_call.1} parent=11 // pred_check_branch
          %101 = sbr.rel (%p99) target = $region16
        $region15: #{tpu_custom_call.1} parent=11 // pred_region
          _
        $region16: #{tpu_custom_call.1} parent=11 // pred_fallthru
          _
      $region12: #{tpu_custom_call.1} parent=5 // pred_fallthru
        _
      %p102 = scmp.lt.s32.totalorder %s11, 3
      // Predicated region
      $region17: #{tpu_custom_call.1} parent=5 // pred_check
        %p103 = pneg %p102
      $region18: #{tpu_custom_call.1} parent=5 // pred_check_branch
        %105 = sbr.rel (%p103) target = $region20
      $region19: #{tpu_custom_call.1} parent=5 // pred_region
        // Predicated region
        $region21: #{tpu_custom_call.1} parent=19 // pred_check
          %p106 = pneg %p31
        $region22: #{tpu_custom_call.1} parent=19 // pred_check_branch
          %108 = sbr.rel (%p106) target = $region24
        $region23: #{tpu_custom_call.1} parent=19 // pred_region
          %s109 = smul.u32 4, %s11
          %s110 = ssub.s32 9, %s109
          %p111 = scmp.lt.s32.totalorder %s110, 4
          %s112 = scalar_select %p111, %s110, 4
          %s113 = smul.u32 128, %s112
          %p114 = scmp.lt.s32.totalorder %s109, 8
          %s115 = scalar_select %p114, %s109, 8
          %s116 = smul.addr %s115, 8
          %s117 = scalar_lea.vmem %s0, %s116
          %s118 = smul.u32 4, %s11
          %s119 = ssub.s32 9, %s118
          %p120 = scmp.lt.s32.totalorder %s119, 4
          %s121 = scalar_select %p120, %s119, 4
          %s122 = smul.u32 128, %s121
        $region24: #{tpu_custom_call.1} parent=19 // pred_fallthru
          _
      $region20: #{tpu_custom_call.1} parent=5 // pred_fallthru
        _
      %p123 = scmp.le.s32.totalorder 1, %s11
      %p124 = scmp.lt.s32.totalorder %s11, 4
      %p125 = pnand %p123, %p124
      %p126 = pneg %p125
      // Predicated region
      $region25: #{tpu_custom_call.1} parent=5 // pred_check
        _
      $region26: #{tpu_custom_call.1} parent=5 // pred_check_branch
        %128 = sbr.rel (%p125) target = $region28
      $region27: #{tpu_custom_call.1} parent=5 // pred_region
        %s129 = ssub.s32 %s11, 1
        %s130 = smul.u32 4, %s16
        %s131 = ssub.s32 9, %s130
        %p132 = scmp.lt.s32.totalorder %s131, 4
        %s133 = scalar_select %p132, %s131, 4
        %s134 = smul.u32 128, %s133
        %p135 = scmp.lt.s32.totalorder %s130, 8
        %s136 = scalar_select %p135, %s130, 8
        %s137 = smul.addr %s136, 8
        %s138 = scalar_lea.vmem %s0, %s137
        %p139 = pneg %p37
        %p140 = pneg %p34
        %p141 = pneg %p58
        %p142 = pneg %p55
        %p143 = pneg %p84
        %p144 = pneg %p81
        %s145 = sand.u32 %s71, 1
        %s146 = scalar_lea.sflag [#allocation3], %s145
        %s147 = sand.u32 %s71, 1
        %s148 = smul.addr %s147, 64
        %s149 = scalar_lea.vmem [#allocation2], %s148
        %s150 = smul.u32 4, %s16
        %s151 = ssub.s32 9, %s150
        %p152 = scmp.lt.s32.totalorder %s151, 4
        %s153 = scalar_select %p152, %s151, 4
        %s154 = smul.u32 128, %s153
        %p155 = scmp.lt.s32.totalorder %s150, 8
        %s156 = scalar_select %p155, %s150, 8
        %s157 = smul.addr %s156, 8
        %s158 = scalar_lea.vmem %s0, %s157
        %s159 = smul.u32 4, %s16
        %s160 = ssub.s32 9, %s159
        %p161 = scmp.lt.s32.totalorder %s160, 4
        %s162 = scalar_select %p161, %s160, 4
        %s163 = smul.u32 128, %s162
        %s164 = smul.u32 4, %s16
        %s165 = ssub.s32 9, %s164
        %p166 = scmp.lt.s32.totalorder %s165, 4
        %s167 = scalar_select %p166, %s165, 4
        %s168 = smul.u32 128, %s167
        %s169 = smul.u32 %s168, 2
        %v170 = vld [vmem:[%s158] sm:$0xff]
        %v171 = vld [vmem:[%s158 + $0x8] sm:$0xff]
        %v172 = vld [vmem:[%s158 + $0x10] sm:$0xff]
        %v173 = vld [vmem:[%s158 + $0x18] sm:$0xff]
        %v174 = vmul.f32 %v170, 1000.0
        %v175 = vmul.f32 %v171, 1000.0
        %v176 = vmul.f32 %v172, 1000.0
        %v177 = vmul.f32 %v173, 1000.0
        %v178 = vld [vmem:[%s1] sm:$0x1]
        %180 = vset.pattern.permute.xlu0 0
        %181 = vperm.xlu0 %180, %v174
        %v182 = vpop.permute.xlu0 %181
        %185 = vset.pattern.permute.xlu0 0
        %186 = vperm.xlu0 %185, %v175
        %v187 = vpop.permute.xlu0 %186
        %190 = vset.pattern.permute.xlu0 0
        %191 = vperm.xlu0 %190, %v176
        %v192 = vpop.permute.xlu0 %191
        %195 = vset.pattern.permute.xlu0 0
        %196 = vperm.xlu0 %195, %v177
        %v197 = vpop.permute.xlu0 %196
        %v200 = vlaneseq
        %v201 = vshrl.u32 %v200, 7
        %v202 = vsub.s32 0, %v201
        %v203 = vrot.slane %v178, %v202
        %v205 = vmul.f32 %v182, %v203
        %v206 = vmul.f32 %v187, %v203
        %v207 = vmul.f32 %v192, %v203
        %v208 = vmul.f32 %v197, %v203
        %v209 = vand.u32 2147483647, %v205
        %vm210 = vcmp.le.f32.partialorder %v209, 0.7853982
        %vm211 = vcmp.lt.s32.totalorder %v205, 0
        %v212 = vand.u32 %v205, 2139095040
        %v213 = vshrl.u32 %v212, 23
        %v214 = vsub.s32 %v213, 127
        %v215 = vand.u32 2147483647, %v205
        %v216 = vand.u32 %v215, 8388607
        %v217 = vor.u32 %v216, 8388608
        %v218 = vsub.s32 0, %v217
        %v219 = vadd.s32 %v214, 1
        %vm220 = vcmp.gt.s32.totalorder %v219, 0
        %v221 = vsel %vm220, %v219, 0
        %v222 = vshrl.u32 %v221, 5
        %v223 = vand.u32 %v221, 31
        %v224 = vsub.s32 32, %v223
        %v225 = vshrl.u32 683565275, %v224
        %v226 = vshll.u32 683565275, %v223
        %v227 = vshrl.u32 2475754826, %v224
        %v228 = vor.u32 %v226, %v227
        %v229 = vshll.u32 2475754826, %v223
        %v230 = vshrl.u32 2131351028, %v224
        %v231 = vor.u32 %v229, %v230
        %v232 = vshll.u32 2131351028, %v223
        %v233 = vshrl.u32 2102212464, %v224
        %v234 = vor.u32 %v232, %v233
        %v235 = vshll.u32 2102212464, %v223
        %v236 = vshrl.u32 920167782, %v224
        %v237 = vor.u32 %v235, %v236
        %v238 = vshll.u32 920167782, %v223
        %v239 = vshrl.u32 1326507024, %v224
        %v240 = vor.u32 %v238, %v239
        %vm241 = vcmp.lt.s32.totalorder %v222, 1
        %vm242 = vcmp.lt.s32.totalorder %v222, 2
        %vm243 = vcmp.lt.s32.totalorder %v222, 3
        %vm244 = vcmp.lt.s32.totalorder %v222, 4
        %v245 = vsel %vm241, %v225, %v228
        %v246 = vsel %vm244, %v234, 2102212464
        %v247 = vsel %vm243, %v231, %v246
        %v248 = vsel %vm242, %v245, %v247
        %v249 = vsel %vm241, %v228, %v231
        %v250 = vsel %vm244, %v237, 920167782
        %v251 = vsel %vm243, %v234, %v250
        %v252 = vsel %vm242, %v249, %v251
        %v253 = vsel %vm241, %v231, %v234
        %v254 = vsel %vm244, %v240, 1326507024
        %v255 = vsel %vm243, %v237, %v254
        %v256 = vsel %vm242, %v253, %v255
        %v257 = vshll.u32 %v217, 8
        %v258 = vmul.u32.u64.compose %v257, %v256
        %v259 = vextract.low.u32 %v258
        %v260 = vextract.high.u32 %v258
        %v261 = vmul.u32.u64.compose %v257, %v252
        %v262 = vextract.low.u32 %v261
        %v263 = vextract.high.u32 %v261
        %v264 = vmul.u32 %v257, %v248
        %v265 = vadd.s32 %v260, %v262
        %vm266 = vc.u32 %v260, %v262
        %v267 = vadd.s32 %v263, 1
        %v268 = vsel %vm266, %v267, %v263
        %v269 = vadd.s32 %v264, %v268
        %v270 = vadd.s32 %v269, 536870912
        %v271 = vshrl.u32 %v270, 30
        %v272 = vshll.u32 %v271, 30
        %v273 = vsub.s32 %v269, %v272
        %vm274 = vcmp.lt.s32.totalorder %v273, 0
        %v275 = vsub.s32 0, %v273
        %v276 = vsel %vm274, %v275, %v273
        %v277 = vclz %v276
        %v278 = vsub.s32 %v277, 2
        %vm279 = vcmp.gt.s32.totalorder 0, %v278
        %v280 = vsel %vm279, 0, %v278
        %v281 = vsub.s32 32, %v280
        %v282 = vshll.u32 %v273, %v280
        %v283 = vshrl.u32 %v265, %v281
        %v284 = vor.u32 %v282, %v283
        %v285 = vsub.s32 4294967266, %v280
        %v286 = vadd.s32 %v285, 127
        %v287 = vshll.u32 %v286, 23
        %v288 = vor.u32 4788187, %v287
        %v289 = vand.u32 2147483647, %v288
        %v291 = vcvt.s32.f32 %v284
        %v292 = vmul.f32 %v291, %v289
        %v293 = vxor.u32 %v292, 2147483648
        %v294 = vsel %vm211, %v293, %v292
        %v295 = vsub.s32 4, %v271
        %v296 = vsel %vm211, %v295, %v271
        %v297 = vsel %vm210, %v205, %v294
        %v298 = vsel %vm210, 0, %v296
        %v299 = vcosq.f32.pop %v297
        %v300 = vsinq.f32.pop %v297
        %vm301 = vweird.f32 %v205
        %v302 = vadd.s32 %v298, 3
        %v303 = vand.u32 %v302, 3
        %vm304 = vcmp.lt.s32.totalorder %v303, 2
        %vm305 = vcmp.eq.s32.totalorder %v303, 0
        %v306 = vxor.u32 %v300, 2147483648
        %v307 = vsel %vm305, %v299, %v306
        %vm308 = vcmp.eq.s32.totalorder %v303, 2
        %v309 = vxor.u32 %v299, 2147483648
        %v310 = vsel %vm308, %v309, %v300
        %v311 = vsel %vm304, %v307, %v310
        %v312 = vsel %vm301, nan, %v311
        %v313 = vand.u32 2147483647, %v206
        %vm314 = vcmp.le.f32.partialorder %v313, 0.7853982
        %vm315 = vcmp.lt.s32.totalorder %v206, 0
        %v316 = vand.u32 %v206, 2139095040
        %v317 = vshrl.u32 %v316, 23
        %v318 = vsub.s32 %v317, 127
        %v319 = vand.u32 2147483647, %v206
        %v320 = vand.u32 %v319, 8388607
        %v321 = vor.u32 %v320, 8388608
        %v322 = vsub.s32 0, %v321
        %v323 = vadd.s32 %v318, 1
        %vm324 = vcmp.gt.s32.totalorder %v323, 0
        %v325 = vsel %vm324, %v323, 0
        %v326 = vshrl.u32 %v325, 5
        %v327 = vand.u32 %v325, 31
        %v328 = vsub.s32 32, %v327
        %v329 = vshrl.u32 683565275, %v328
        %v330 = vshll.u32 683565275, %v327
        %v331 = vshrl.u32 2475754826, %v328
        %v332 = vor.u32 %v330, %v331
        %v333 = vshll.u32 2475754826, %v327
        %v334 = vshrl.u32 2131351028, %v328
        %v335 = vor.u32 %v333, %v334
        %v336 = vshll.u32 2131351028, %v327
        %v337 = vshrl.u32 2102212464, %v328
        %v338 = vor.u32 %v336, %v337
        %v339 = vshll.u32 2102212464, %v327
        %v340 = vshrl.u32 920167782, %v328
        %v341 = vor.u32 %v339, %v340
        %v342 = vshll.u32 920167782, %v327
        %v343 = vshrl.u32 1326507024, %v328
        %v344 = vor.u32 %v342, %v343
        %vm345 = vcmp.lt.s32.totalorder %v326, 1
        %vm346 = vcmp.lt.s32.totalorder %v326, 2
        %vm347 = vcmp.lt.s32.totalorder %v326, 3
        %vm348 = vcmp.lt.s32.totalorder %v326, 4
        %v349 = vsel %vm345, %v329, %v332
        %v350 = vsel %vm348, %v338, 2102212464
        %v351 = vsel %vm347, %v335, %v350
        %v352 = vsel %vm346, %v349, %v351
        %v353 = vsel %vm345, %v332, %v335
        %v354 = vsel %vm348, %v341, 920167782
        %v355 = vsel %vm347, %v338, %v354
        %v356 = vsel %vm346, %v353, %v355
        %v357 = vsel %vm345, %v335, %v338
        %v358 = vsel %vm348, %v344, 1326507024
        %v359 = vsel %vm347, %v341, %v358
        %v360 = vsel %vm346, %v357, %v359
        %v361 = vshll.u32 %v321, 8
        %v362 = vmul.u32.u64.compose %v361, %v360
        %v363 = vextract.low.u32 %v362
        %v364 = vextract.high.u32 %v362
        %v365 = vmul.u32.u64.compose %v361, %v356
        %v366 = vextract.low.u32 %v365
        %v367 = vextract.high.u32 %v365
        %v368 = vmul.u32 %v361, %v352
        %v369 = vadd.s32 %v364, %v366
        %vm370 = vc.u32 %v364, %v366
        %v371 = vadd.s32 %v367, 1
        %v372 = vsel %vm370, %v371, %v367
        %v373 = vadd.s32 %v368, %v372
        %v374 = vadd.s32 %v373, 536870912
        %v375 = vshrl.u32 %v374, 30
        %v376 = vshll.u32 %v375, 30
        %v377 = vsub.s32 %v373, %v376
        %vm378 = vcmp.lt.s32.totalorder %v377, 0
        %v379 = vsub.s32 0, %v377
        %v380 = vsel %vm378, %v379, %v377
        %v381 = vclz %v380
        %v382 = vsub.s32 %v381, 2
        %vm383 = vcmp.gt.s32.totalorder 0, %v382
        %v384 = vsel %vm383, 0, %v382
        %v385 = vsub.s32 32, %v384
        %v386 = vshll.u32 %v377, %v384
        %v387 = vshrl.u32 %v369, %v385
        %v388 = vor.u32 %v386, %v387
        %v389 = vsub.s32 4294967266, %v384
        %v390 = vadd.s32 %v389, 127
        %v391 = vshll.u32 %v390, 23
        %v392 = vor.u32 4788187, %v391
        %v393 = vand.u32 2147483647, %v392
        %v395 = vcvt.s32.f32 %v388
        %v396 = vmul.f32 %v395, %v393
        %v397 = vxor.u32 %v396, 2147483648
        %v398 = vsel %vm315, %v397, %v396
        %v399 = vsub.s32 4, %v375
        %v400 = vsel %vm315, %v399, %v375
        %v401 = vsel %vm314, %v206, %v398
        %v402 = vsel %vm314, 0, %v400
        %v403 = vcosq.f32.pop %v401
        %v404 = vsinq.f32.pop %v401
        %vm405 = vweird.f32 %v206
        %v406 = vadd.s32 %v402, 3
        %v407 = vand.u32 %v406, 3
        %vm408 = vcmp.lt.s32.totalorder %v407, 2
        %vm409 = vcmp.eq.s32.totalorder %v407, 0
        %v410 = vxor.u32 %v404, 2147483648
        %v411 = vsel %vm409, %v403, %v410
        %vm412 = vcmp.eq.s32.totalorder %v407, 2
        %v413 = vxor.u32 %v403, 2147483648
        %v414 = vsel %vm412, %v413, %v404
        %v415 = vsel %vm408, %v411, %v414
        %v416 = vsel %vm405, nan, %v415
        %v417 = vand.u32 2147483647, %v207
        %vm418 = vcmp.le.f32.partialorder %v417, 0.7853982
        %vm419 = vcmp.lt.s32.totalorder %v207, 0
        %v420 = vand.u32 %v207, 2139095040
        %v421 = vshrl.u32 %v420, 23
        %v422 = vsub.s32 %v421, 127
        %v423 = vand.u32 2147483647, %v207
        %v424 = vand.u32 %v423, 8388607
        %v425 = vor.u32 %v424, 8388608
        %v426 = vsub.s32 0, %v425
        %v427 = vadd.s32 %v422, 1
        %vm428 = vcmp.gt.s32.totalorder %v427, 0
        %v429 = vsel %vm428, %v427, 0
        %v430 = vshrl.u32 %v429, 5
        %v431 = vand.u32 %v429, 31
        %v432 = vsub.s32 32, %v431
        %v433 = vshrl.u32 683565275, %v432
        %v434 = vshll.u32 683565275, %v431
        %v435 = vshrl.u32 2475754826, %v432
        %v436 = vor.u32 %v434, %v435
        %v437 = vshll.u32 2475754826, %v431
        %v438 = vshrl.u32 2131351028, %v432
        %v439 = vor.u32 %v437, %v438
        %v440 = vshll.u32 2131351028, %v431
        %v441 = vshrl.u32 2102212464, %v432
        %v442 = vor.u32 %v440, %v441
        %v443 = vshll.u32 2102212464, %v431
        %v444 = vshrl.u32 920167782, %v432
        %v445 = vor.u32 %v443, %v444
        %v446 = vshll.u32 920167782, %v431
        %v447 = vshrl.u32 1326507024, %v432
        %v448 = vor.u32 %v446, %v447
        %vm449 = vcmp.lt.s32.totalorder %v430, 1
        %vm450 = vcmp.lt.s32.totalorder %v430, 2
        %vm451 = vcmp.lt.s32.totalorder %v430, 3
        %vm452 = vcmp.lt.s32.totalorder %v430, 4
        %v453 = vsel %vm449, %v433, %v436
        %v454 = vsel %vm452, %v442, 2102212464
        %v455 = vsel %vm451, %v439, %v454
        %v456 = vsel %vm450, %v453, %v455
        %v457 = vsel %vm449, %v436, %v439
        %v458 = vsel %vm452, %v445, 920167782
        %v459 = vsel %vm451, %v442, %v458
        %v460 = vsel %vm450, %v457, %v459
        %v461 = vsel %vm449, %v439, %v442
        %v462 = vsel %vm452, %v448, 1326507024
        %v463 = vsel %vm451, %v445, %v462
        %v464 = vsel %vm450, %v461, %v463
        %v465 = vshll.u32 %v425, 8
        %v466 = vmul.u32.u64.compose %v465, %v464
        %v467 = vextract.low.u32 %v466
        %v468 = vextract.high.u32 %v466
        %v469 = vmul.u32.u64.compose %v465, %v460
        %v470 = vextract.low.u32 %v469
        %v471 = vextract.high.u32 %v469
        %v472 = vmul.u32 %v465, %v456
        %v473 = vadd.s32 %v468, %v470
        %vm474 = vc.u32 %v468, %v470
        %v475 = vadd.s32 %v471, 1
        %v476 = vsel %vm474, %v475, %v471
        %v477 = vadd.s32 %v472, %v476
        %v478 = vadd.s32 %v477, 536870912
        %v479 = vshrl.u32 %v478, 30
        %v480 = vshll.u32 %v479, 30
        %v481 = vsub.s32 %v477, %v480
        %vm482 = vcmp.lt.s32.totalorder %v481, 0
        %v483 = vsub.s32 0, %v481
        %v484 = vsel %vm482, %v483, %v481
        %v485 = vclz %v484
        %v486 = vsub.s32 %v485, 2
        %vm487 = vcmp.gt.s32.totalorder 0, %v486
        %v488 = vsel %vm487, 0, %v486
        %v489 = vsub.s32 32, %v488
        %v490 = vshll.u32 %v481, %v488
        %v491 = vshrl.u32 %v473, %v489
        %v492 = vor.u32 %v490, %v491
        %v493 = vsub.s32 4294967266, %v488
        %v494 = vadd.s32 %v493, 127
        %v495 = vshll.u32 %v494, 23
        %v496 = vor.u32 4788187, %v495
        %v497 = vand.u32 2147483647, %v496
        %v499 = vcvt.s32.f32 %v492
        %v500 = vmul.f32 %v499, %v497
        %v501 = vxor.u32 %v500, 2147483648
        %v502 = vsel %vm419, %v501, %v500
        %v503 = vsub.s32 4, %v479
        %v504 = vsel %vm419, %v503, %v479
        %v505 = vsel %vm418, %v207, %v502
        %v506 = vsel %vm418, 0, %v504
        %v507 = vcosq.f32.pop %v505
        %v508 = vsinq.f32.pop %v505
        %vm509 = vweird.f32 %v207
        %v510 = vadd.s32 %v506, 3
        %v511 = vand.u32 %v510, 3
        %vm512 = vcmp.lt.s32.totalorder %v511, 2
        %vm513 = vcmp.eq.s32.totalorder %v511, 0
        %v514 = vxor.u32 %v508, 2147483648
        %v515 = vsel %vm513, %v507, %v514
        %vm516 = vcmp.eq.s32.totalorder %v511, 2
        %v517 = vxor.u32 %v507, 2147483648
        %v518 = vsel %vm516, %v517, %v508
        %v519 = vsel %vm512, %v515, %v518
        %v520 = vsel %vm509, nan, %v519
        %v521 = vand.u32 2147483647, %v208
        %vm522 = vcmp.le.f32.partialorder %v521, 0.7853982
        %vm523 = vcmp.lt.s32.totalorder %v208, 0
        %v524 = vand.u32 %v208, 2139095040
        %v525 = vshrl.u32 %v524, 23
        %v526 = vsub.s32 %v525, 127
        %v527 = vand.u32 2147483647, %v208
        %v528 = vand.u32 %v527, 8388607
        %v529 = vor.u32 %v528, 8388608
        %v530 = vsub.s32 0, %v529
        %v531 = vadd.s32 %v526, 1
        %vm532 = vcmp.gt.s32.totalorder %v531, 0
        %v533 = vsel %vm532, %v531, 0
        %v534 = vshrl.u32 %v533, 5
        %v535 = vand.u32 %v533, 31
        %v536 = vsub.s32 32, %v535
        %v537 = vshrl.u32 683565275, %v536
        %v538 = vshll.u32 683565275, %v535
        %v539 = vshrl.u32 2475754826, %v536
        %v540 = vor.u32 %v538, %v539
        %v541 = vshll.u32 2475754826, %v535
        %v542 = vshrl.u32 2131351028, %v536
        %v543 = vor.u32 %v541, %v542
        %v544 = vshll.u32 2131351028, %v535
        %v545 = vshrl.u32 2102212464, %v536
        %v546 = vor.u32 %v544, %v545
        %v547 = vshll.u32 2102212464, %v535
        %v548 = vshrl.u32 920167782, %v536
        %v549 = vor.u32 %v547, %v548
        %v550 = vshll.u32 920167782, %v535
        %v551 = vshrl.u32 1326507024, %v536
        %v552 = vor.u32 %v550, %v551
        %vm553 = vcmp.lt.s32.totalorder %v534, 1
        %vm554 = vcmp.lt.s32.totalorder %v534, 2
        %vm555 = vcmp.lt.s32.totalorder %v534, 3
        %vm556 = vcmp.lt.s32.totalorder %v534, 4
        %v557 = vsel %vm553, %v537, %v540
        %v558 = vsel %vm556, %v546, 2102212464
        %v559 = vsel %vm555, %v543, %v558
        %v560 = vsel %vm554, %v557, %v559
        %v561 = vsel %vm553, %v540, %v543
        %v562 = vsel %vm556, %v549, 920167782
        %v563 = vsel %vm555, %v546, %v562
        %v564 = vsel %vm554, %v561, %v563
        %v565 = vsel %vm553, %v543, %v546
        %v566 = vsel %vm556, %v552, 1326507024
        %v567 = vsel %vm555, %v549, %v566
        %v568 = vsel %vm554, %v565, %v567
        %v569 = vshll.u32 %v529, 8
        %v570 = vmul.u32.u64.compose %v569, %v568
        %v571 = vextract.low.u32 %v570
        %v572 = vextract.high.u32 %v570
        %v573 = vmul.u32.u64.compose %v569, %v564
        %v574 = vextract.low.u32 %v573
        %v575 = vextract.high.u32 %v573
        %v576 = vmul.u32 %v569, %v560
        %v577 = vadd.s32 %v572, %v574
        %vm578 = vc.u32 %v572, %v574
        %v579 = vadd.s32 %v575, 1
        %v580 = vsel %vm578, %v579, %v575
        %v581 = vadd.s32 %v576, %v580
        %v582 = vadd.s32 %v581, 536870912
        %v583 = vshrl.u32 %v582, 30
        %v584 = vshll.u32 %v583, 30
        %v585 = vsub.s32 %v581, %v584
        %vm586 = vcmp.lt.s32.totalorder %v585, 0
        %v587 = vsub.s32 0, %v585
        %v588 = vsel %vm586, %v587, %v585
        %v589 = vclz %v588
        %v590 = vsub.s32 %v589, 2
        %vm591 = vcmp.gt.s32.totalorder 0, %v590
        %v592 = vsel %vm591, 0, %v590
        %v593 = vsub.s32 32, %v592
        %v594 = vshll.u32 %v585, %v592
        %v595 = vshrl.u32 %v577, %v593
        %v596 = vor.u32 %v594, %v595
        %v597 = vsub.s32 4294967266, %v592
        %v598 = vadd.s32 %v597, 127
        %v599 = vshll.u32 %v598, 23
        %v600 = vor.u32 4788187, %v599
        %v601 = vand.u32 2147483647, %v600
        %v603 = vcvt.s32.f32 %v596
        %v604 = vmul.f32 %v603, %v601
        %v605 = vxor.u32 %v604, 2147483648
        %v606 = vsel %vm523, %v605, %v604
        %v607 = vsub.s32 4, %v583
        %v608 = vsel %vm523, %v607, %v583
        %v609 = vsel %vm522, %v208, %v606
        %v610 = vsel %vm522, 0, %v608
        %v611 = vcosq.f32.pop %v609
        %v612 = vsinq.f32.pop %v609
        %vm613 = vweird.f32 %v208
        %v614 = vadd.s32 %v610, 3
        %v615 = vand.u32 %v614, 3
        %vm616 = vcmp.lt.s32.totalorder %v615, 2
        %vm617 = vcmp.eq.s32.totalorder %v615, 0
        %v618 = vxor.u32 %v612, 2147483648
        %v619 = vsel %vm617, %v611, %v618
        %vm620 = vcmp.eq.s32.totalorder %v615, 2
        %v621 = vxor.u32 %v611, 2147483648
        %v622 = vsel %vm620, %v621, %v612
        %v623 = vsel %vm616, %v619, %v622
        %v624 = vsel %vm613, nan, %v623
        %625 = vst [vmem:[%s149] sm:$0xff] %v312
        %626 = vst [vmem:[%s149 + $0x10] sm:$0xff] %v416
        %627 = vst [vmem:[%s149 + $0x20] sm:$0xff] %v520
        %628 = vst [vmem:[%s149 + $0x30] sm:$0xff] %v624
        %v629 = vand.u32 2147483647, %v205
        %vm630 = vcmp.le.f32.partialorder %v629, 0.7853982
        %vm631 = vcmp.lt.s32.totalorder %v205, 0
        %v632 = vand.u32 %v205, 2139095040
        %v633 = vshrl.u32 %v632, 23
        %v634 = vsub.s32 %v633, 127
        %v635 = vand.u32 2147483647, %v205
        %v636 = vand.u32 %v635, 8388607
        %v637 = vor.u32 %v636, 8388608
        %v638 = vsub.s32 0, %v637
        %v639 = vadd.s32 %v634, 1
        %vm640 = vcmp.gt.s32.totalorder %v639, 0
        %v641 = vsel %vm640, %v639, 0
        %v642 = vshrl.u32 %v641, 5
        %v643 = vand.u32 %v641, 31
        %v644 = vsub.s32 32, %v643
        %v645 = vshrl.u32 683565275, %v644
        %v646 = vshll.u32 683565275, %v643
        %v647 = vshrl.u32 2475754826, %v644
        %v648 = vor.u32 %v646, %v647
        %v649 = vshll.u32 2475754826, %v643
        %v650 = vshrl.u32 2131351028, %v644
        %v651 = vor.u32 %v649, %v650
        %v652 = vshll.u32 2131351028, %v643
        %v653 = vshrl.u32 2102212464, %v644
        %v654 = vor.u32 %v652, %v653
        %v655 = vshll.u32 2102212464, %v643
        %v656 = vshrl.u32 920167782, %v644
        %v657 = vor.u32 %v655, %v656
        %v658 = vshll.u32 920167782, %v643
        %v659 = vshrl.u32 1326507024, %v644
        %v660 = vor.u32 %v658, %v659
        %vm661 = vcmp.lt.s32.totalorder %v642, 1
        %vm662 = vcmp.lt.s32.totalorder %v642, 2
        %vm663 = vcmp.lt.s32.totalorder %v642, 3
        %vm664 = vcmp.lt.s32.totalorder %v642, 4
        %v665 = vsel %vm661, %v645, %v648
        %v666 = vsel %vm664, %v654, 2102212464
        %v667 = vsel %vm663, %v651, %v666
        %v668 = vsel %vm662, %v665, %v667
        %v669 = vsel %vm661, %v648, %v651
        %v670 = vsel %vm664, %v657, 920167782
        %v671 = vsel %vm663, %v654, %v670
        %v672 = vsel %vm662, %v669, %v671
        %v673 = vsel %vm661, %v651, %v654
        %v674 = vsel %vm664, %v660, 1326507024
        %v675 = vsel %vm663, %v657, %v674
        %v676 = vsel %vm662, %v673, %v675
        %v677 = vshll.u32 %v637, 8
        %v678 = vmul.u32.u64.compose %v677, %v676
        %v679 = vextract.low.u32 %v678
        %v680 = vextract.high.u32 %v678
        %v681 = vmul.u32.u64.compose %v677, %v672
        %v682 = vextract.low.u32 %v681
        %v683 = vextract.high.u32 %v681
        %v684 = vmul.u32 %v677, %v668
        %v685 = vadd.s32 %v680, %v682
        %vm686 = vc.u32 %v680, %v682
        %v687 = vadd.s32 %v683, 1
        %v688 = vsel %vm686, %v687, %v683
        %v689 = vadd.s32 %v684, %v688
        %v690 = vadd.s32 %v689, 536870912
        %v691 = vshrl.u32 %v690, 30
        %v692 = vshll.u32 %v691, 30
        %v693 = vsub.s32 %v689, %v692
        %vm694 = vcmp.lt.s32.totalorder %v693, 0
        %v695 = vsub.s32 0, %v693
        %v696 = vsel %vm694, %v695, %v693
        %v697 = vclz %v696
        %v698 = vsub.s32 %v697, 2
        %vm699 = vcmp.gt.s32.totalorder 0, %v698
        %v700 = vsel %vm699, 0, %v698
        %v701 = vsub.s32 32, %v700
        %v702 = vshll.u32 %v693, %v700
        %v703 = vshrl.u32 %v685, %v701
        %v704 = vor.u32 %v702, %v703
        %v705 = vsub.s32 4294967266, %v700
        %v706 = vadd.s32 %v705, 127
        %v707 = vshll.u32 %v706, 23
        %v708 = vor.u32 4788187, %v707
        %v709 = vand.u32 2147483647, %v708
        %v711 = vcvt.s32.f32 %v704
        %v712 = vmul.f32 %v711, %v709
        %v713 = vxor.u32 %v712, 2147483648
        %v714 = vsel %vm631, %v713, %v712
        %v715 = vsub.s32 4, %v691
        %v716 = vsel %vm631, %v715, %v691
        %v717 = vsel %vm630, %v205, %v714
        %v718 = vsel %vm630, 0, %v716
        %v719 = vcosq.f32.pop %v717
        %v720 = vsinq.f32.pop %v717
        %vm721 = vweird.f32 %v205
        %v722 = vand.u32 %v718, 3
        %vm723 = vcmp.lt.s32.totalorder %v722, 2
        %vm724 = vcmp.eq.s32.totalorder %v722, 0
        %v725 = vxor.u32 %v720, 2147483648
        %v726 = vsel %vm724, %v719, %v725
        %vm727 = vcmp.eq.s32.totalorder %v722, 2
        %v728 = vxor.u32 %v719, 2147483648
        %v729 = vsel %vm727, %v728, %v720
        %v730 = vsel %vm723, %v726, %v729
        %v731 = vsel %vm721, nan, %v730
        %v732 = vand.u32 2147483647, %v206
        %vm733 = vcmp.le.f32.partialorder %v732, 0.7853982
        %vm734 = vcmp.lt.s32.totalorder %v206, 0
        %v735 = vand.u32 %v206, 2139095040
        %v736 = vshrl.u32 %v735, 23
        %v737 = vsub.s32 %v736, 127
        %v738 = vand.u32 2147483647, %v206
        %v739 = vand.u32 %v738, 8388607
        %v740 = vor.u32 %v739, 8388608
        %v741 = vsub.s32 0, %v740
        %v742 = vadd.s32 %v737, 1
        %vm743 = vcmp.gt.s32.totalorder %v742, 0
        %v744 = vsel %vm743, %v742, 0
        %v745 = vshrl.u32 %v744, 5
        %v746 = vand.u32 %v744, 31
        %v747 = vsub.s32 32, %v746
        %v748 = vshrl.u32 683565275, %v747
        %v749 = vshll.u32 683565275, %v746
        %v750 = vshrl.u32 2475754826, %v747
        %v751 = vor.u32 %v749, %v750
        %v752 = vshll.u32 2475754826, %v746
        %v753 = vshrl.u32 2131351028, %v747
        %v754 = vor.u32 %v752, %v753
        %v755 = vshll.u32 2131351028, %v746
        %v756 = vshrl.u32 2102212464, %v747
        %v757 = vor.u32 %v755, %v756
        %v758 = vshll.u32 2102212464, %v746
        %v759 = vshrl.u32 920167782, %v747
        %v760 = vor.u32 %v758, %v759
        %v761 = vshll.u32 920167782, %v746
        %v762 = vshrl.u32 1326507024, %v747
        %v763 = vor.u32 %v761, %v762
        %vm764 = vcmp.lt.s32.totalorder %v745, 1
        %vm765 = vcmp.lt.s32.totalorder %v745, 2
        %vm766 = vcmp.lt.s32.totalorder %v745, 3
        %vm767 = vcmp.lt.s32.totalorder %v745, 4
        %v768 = vsel %vm764, %v748, %v751
        %v769 = vsel %vm767, %v757, 2102212464
        %v770 = vsel %vm766, %v754, %v769
        %v771 = vsel %vm765, %v768, %v770
        %v772 = vsel %vm764, %v751, %v754
        %v773 = vsel %vm767, %v760, 920167782
        %v774 = vsel %vm766, %v757, %v773
        %v775 = vsel %vm765, %v772, %v774
        %v776 = vsel %vm764, %v754, %v757
        %v777 = vsel %vm767, %v763, 1326507024
        %v778 = vsel %vm766, %v760, %v777
        %v779 = vsel %vm765, %v776, %v778
        %v780 = vshll.u32 %v740, 8
        %v781 = vmul.u32.u64.compose %v780, %v779
        %v782 = vextract.low.u32 %v781
        %v783 = vextract.high.u32 %v781
        %v784 = vmul.u32.u64.compose %v780, %v775
        %v785 = vextract.low.u32 %v784
        %v786 = vextract.high.u32 %v784
        %v787 = vmul.u32 %v780, %v771
        %v788 = vadd.s32 %v783, %v785
        %vm789 = vc.u32 %v783, %v785
        %v790 = vadd.s32 %v786, 1
        %v791 = vsel %vm789, %v790, %v786
        %v792 = vadd.s32 %v787, %v791
        %v793 = vadd.s32 %v792, 536870912
        %v794 = vshrl.u32 %v793, 30
        %v795 = vshll.u32 %v794, 30
        %v796 = vsub.s32 %v792, %v795
        %vm797 = vcmp.lt.s32.totalorder %v796, 0
        %v798 = vsub.s32 0, %v796
        %v799 = vsel %vm797, %v798, %v796
        %v800 = vclz %v799
        %v801 = vsub.s32 %v800, 2
        %vm802 = vcmp.gt.s32.totalorder 0, %v801
        %v803 = vsel %vm802, 0, %v801
        %v804 = vsub.s32 32, %v803
        %v805 = vshll.u32 %v796, %v803
        %v806 = vshrl.u32 %v788, %v804
        %v807 = vor.u32 %v805, %v806
        %v808 = vsub.s32 4294967266, %v803
        %v809 = vadd.s32 %v808, 127
        %v810 = vshll.u32 %v809, 23
        %v811 = vor.u32 4788187, %v810
        %v812 = vand.u32 2147483647, %v811
        %v814 = vcvt.s32.f32 %v807
        %v815 = vmul.f32 %v814, %v812
        %v816 = vxor.u32 %v815, 2147483648
        %v817 = vsel %vm734, %v816, %v815
        %v818 = vsub.s32 4, %v794
        %v819 = vsel %vm734, %v818, %v794
        %v820 = vsel %vm733, %v206, %v817
        %v821 = vsel %vm733, 0, %v819
        %v822 = vcosq.f32.pop %v820
        %v823 = vsinq.f32.pop %v820
        %vm824 = vweird.f32 %v206
        %v825 = vand.u32 %v821, 3
        %vm826 = vcmp.lt.s32.totalorder %v825, 2
        %vm827 = vcmp.eq.s32.totalorder %v825, 0
        %v828 = vxor.u32 %v823, 2147483648
        %v829 = vsel %vm827, %v822, %v828
        %vm830 = vcmp.eq.s32.totalorder %v825, 2
        %v831 = vxor.u32 %v822, 2147483648
        %v832 = vsel %vm830, %v831, %v823
        %v833 = vsel %vm826, %v829, %v832
        %v834 = vsel %vm824, nan, %v833
        %v835 = vand.u32 2147483647, %v207
        %vm836 = vcmp.le.f32.partialorder %v835, 0.7853982
        %vm837 = vcmp.lt.s32.totalorder %v207, 0
        %v838 = vand.u32 %v207, 2139095040
        %v839 = vshrl.u32 %v838, 23
        %v840 = vsub.s32 %v839, 127
        %v841 = vand.u32 2147483647, %v207
        %v842 = vand.u32 %v841, 8388607
        %v843 = vor.u32 %v842, 8388608
        %v844 = vsub.s32 0, %v843
        %v845 = vadd.s32 %v840, 1
        %vm846 = vcmp.gt.s32.totalorder %v845, 0
        %v847 = vsel %vm846, %v845, 0
        %v848 = vshrl.u32 %v847, 5
        %v849 = vand.u32 %v847, 31
        %v850 = vsub.s32 32, %v849
        %v851 = vshrl.u32 683565275, %v850
        %v852 = vshll.u32 683565275, %v849
        %v853 = vshrl.u32 2475754826, %v850
        %v854 = vor.u32 %v852, %v853
        %v855 = vshll.u32 2475754826, %v849
        %v856 = vshrl.u32 2131351028, %v850
        %v857 = vor.u32 %v855, %v856
        %v858 = vshll.u32 2131351028, %v849
        %v859 = vshrl.u32 2102212464, %v850
        %v860 = vor.u32 %v858, %v859
        %v861 = vshll.u32 2102212464, %v849
        %v862 = vshrl.u32 920167782, %v850
        %v863 = vor.u32 %v861, %v862
        %v864 = vshll.u32 920167782, %v849
        %v865 = vshrl.u32 1326507024, %v850
        %v866 = vor.u32 %v864, %v865
        %vm867 = vcmp.lt.s32.totalorder %v848, 1
        %vm868 = vcmp.lt.s32.totalorder %v848, 2
        %vm869 = vcmp.lt.s32.totalorder %v848, 3
        %vm870 = vcmp.lt.s32.totalorder %v848, 4
        %v871 = vsel %vm867, %v851, %v854
        %v872 = vsel %vm870, %v860, 2102212464
        %v873 = vsel %vm869, %v857, %v872
        %v874 = vsel %vm868, %v871, %v873
        %v875 = vsel %vm867, %v854, %v857
        %v876 = vsel %vm870, %v863, 920167782
        %v877 = vsel %vm869, %v860, %v876
        %v878 = vsel %vm868, %v875, %v877
        %v879 = vsel %vm867, %v857, %v860
        %v880 = vsel %vm870, %v866, 1326507024
        %v881 = vsel %vm869, %v863, %v880
        %v882 = vsel %vm868, %v879, %v881
        %v883 = vshll.u32 %v843, 8
        %v884 = vmul.u32.u64.compose %v883, %v882
        %v885 = vextract.low.u32 %v884
        %v886 = vextract.high.u32 %v884
        %v887 = vmul.u32.u64.compose %v883, %v878
        %v888 = vextract.low.u32 %v887
        %v889 = vextract.high.u32 %v887
        %v890 = vmul.u32 %v883, %v874
        %v891 = vadd.s32 %v886, %v888
        %vm892 = vc.u32 %v886, %v888
        %v893 = vadd.s32 %v889, 1
        %v894 = vsel %vm892, %v893, %v889
        %v895 = vadd.s32 %v890, %v894
        %v896 = vadd.s32 %v895, 536870912
        %v897 = vshrl.u32 %v896, 30
        %v898 = vshll.u32 %v897, 30
        %v899 = vsub.s32 %v895, %v898
        %vm900 = vcmp.lt.s32.totalorder %v899, 0
        %v901 = vsub.s32 0, %v899
        %v902 = vsel %vm900, %v901, %v899
        %v903 = vclz %v902
        %v904 = vsub.s32 %v903, 2
        %vm905 = vcmp.gt.s32.totalorder 0, %v904
        %v906 = vsel %vm905, 0, %v904
        %v907 = vsub.s32 32, %v906
        %v908 = vshll.u32 %v899, %v906
        %v909 = vshrl.u32 %v891, %v907
        %v910 = vor.u32 %v908, %v909
        %v911 = vsub.s32 4294967266, %v906
        %v912 = vadd.s32 %v911, 127
        %v913 = vshll.u32 %v912, 23
        %v914 = vor.u32 4788187, %v913
        %v915 = vand.u32 2147483647, %v914
        %v917 = vcvt.s32.f32 %v910
        %v918 = vmul.f32 %v917, %v915
        %v919 = vxor.u32 %v918, 2147483648
        %v920 = vsel %vm837, %v919, %v918
        %v921 = vsub.s32 4, %v897
        %v922 = vsel %vm837, %v921, %v897
        %v923 = vsel %vm836, %v207, %v920
        %v924 = vsel %vm836, 0, %v922
        %v925 = vcosq.f32.pop %v923
        %v926 = vsinq.f32.pop %v923
        %vm927 = vweird.f32 %v207
        %v928 = vand.u32 %v924, 3
        %vm929 = vcmp.lt.s32.totalorder %v928, 2
        %vm930 = vcmp.eq.s32.totalorder %v928, 0
        %v931 = vxor.u32 %v926, 2147483648
        %v932 = vsel %vm930, %v925, %v931
        %vm933 = vcmp.eq.s32.totalorder %v928, 2
        %v934 = vxor.u32 %v925, 2147483648
        %v935 = vsel %vm933, %v934, %v926
        %v936 = vsel %vm929, %v932, %v935
        %v937 = vsel %vm927, nan, %v936
        %v938 = vand.u32 2147483647, %v208
        %vm939 = vcmp.le.f32.partialorder %v938, 0.7853982
        %vm940 = vcmp.lt.s32.totalorder %v208, 0
        %v941 = vand.u32 %v208, 2139095040
        %v942 = vshrl.u32 %v941, 23
        %v943 = vsub.s32 %v942, 127
        %v944 = vand.u32 2147483647, %v208
        %v945 = vand.u32 %v944, 8388607
        %v946 = vor.u32 %v945, 8388608
        %v947 = vsub.s32 0, %v946
        %v948 = vadd.s32 %v943, 1
        %vm949 = vcmp.gt.s32.totalorder %v948, 0
        %v950 = vsel %vm949, %v948, 0
        %v951 = vshrl.u32 %v950, 5
        %v952 = vand.u32 %v950, 31
        %v953 = vsub.s32 32, %v952
        %v954 = vshrl.u32 683565275, %v953
        %v955 = vshll.u32 683565275, %v952
        %v956 = vshrl.u32 2475754826, %v953
        %v957 = vor.u32 %v955, %v956
        %v958 = vshll.u32 2475754826, %v952
        %v959 = vshrl.u32 2131351028, %v953
        %v960 = vor.u32 %v958, %v959
        %v961 = vshll.u32 2131351028, %v952
        %v962 = vshrl.u32 2102212464, %v953
        %v963 = vor.u32 %v961, %v962
        %v964 = vshll.u32 2102212464, %v952
        %v965 = vshrl.u32 920167782, %v953
        %v966 = vor.u32 %v964, %v965
        %v967 = vshll.u32 920167782, %v952
        %v968 = vshrl.u32 1326507024, %v953
        %v969 = vor.u32 %v967, %v968
        %vm970 = vcmp.lt.s32.totalorder %v951, 1
        %vm971 = vcmp.lt.s32.totalorder %v951, 2
        %vm972 = vcmp.lt.s32.totalorder %v951, 3
        %vm973 = vcmp.lt.s32.totalorder %v951, 4
        %v974 = vsel %vm970, %v954, %v957
        %v975 = vsel %vm973, %v963, 2102212464
        %v976 = vsel %vm972, %v960, %v975
        %v977 = vsel %vm971, %v974, %v976
        %v978 = vsel %vm970, %v957, %v960
        %v979 = vsel %vm973, %v966, 920167782
        %v980 = vsel %vm972, %v963, %v979
        %v981 = vsel %vm971, %v978, %v980
        %v982 = vsel %vm970, %v960, %v963
        %v983 = vsel %vm973, %v969, 1326507024
        %v984 = vsel %vm972, %v966, %v983
        %v985 = vsel %vm971, %v982, %v984
        %v986 = vshll.u32 %v946, 8
        %v987 = vmul.u32.u64.compose %v986, %v985
        %v988 = vextract.low.u32 %v987
        %v989 = vextract.high.u32 %v987
        %v990 = vmul.u32.u64.compose %v986, %v981
        %v991 = vextract.low.u32 %v990
        %v992 = vextract.high.u32 %v990
        %v993 = vmul.u32 %v986, %v977
        %v994 = vadd.s32 %v989, %v991
        %vm995 = vc.u32 %v989, %v991
        %v996 = vadd.s32 %v992, 1
        %v997 = vsel %vm995, %v996, %v992
        %v998 = vadd.s32 %v993, %v997
        %v999 = vadd.s32 %v998, 536870912
        %v1000 = vshrl.u32 %v999, 30
        %v1001 = vshll.u32 %v1000, 30
        %v1002 = vsub.s32 %v998, %v1001
        %vm1003 = vcmp.lt.s32.totalorder %v1002, 0
        %v1004 = vsub.s32 0, %v1002
        %v1005 = vsel %vm1003, %v1004, %v1002
        %v1006 = vclz %v1005
        %v1007 = vsub.s32 %v1006, 2
        %vm1008 = vcmp.gt.s32.totalorder 0, %v1007
        %v1009 = vsel %vm1008, 0, %v1007
        %v1010 = vsub.s32 32, %v1009
        %v1011 = vshll.u32 %v1002, %v1009
        %v1012 = vshrl.u32 %v994, %v1010
        %v1013 = vor.u32 %v1011, %v1012
        %v1014 = vsub.s32 4294967266, %v1009
        %v1015 = vadd.s32 %v1014, 127
        %v1016 = vshll.u32 %v1015, 23
        %v1017 = vor.u32 4788187, %v1016
        %v1018 = vand.u32 2147483647, %v1017
        %v1020 = vcvt.s32.f32 %v1013
        %v1021 = vmul.f32 %v1020, %v1018
        %v1022 = vxor.u32 %v1021, 2147483648
        %v1023 = vsel %vm940, %v1022, %v1021
        %v1024 = vsub.s32 4, %v1000
        %v1025 = vsel %vm940, %v1024, %v1000
        %v1026 = vsel %vm939, %v208, %v1023
        %v1027 = vsel %vm939, 0, %v1025
        %v1028 = vcosq.f32.pop %v1026
        %v1029 = vsinq.f32.pop %v1026
        %vm1030 = vweird.f32 %v208
        %v1031 = vand.u32 %v1027, 3
        %vm1032 = vcmp.lt.s32.totalorder %v1031, 2
        %vm1033 = vcmp.eq.s32.totalorder %v1031, 0
        %v1034 = vxor.u32 %v1029, 2147483648
        %v1035 = vsel %vm1033, %v1028, %v1034
        %vm1036 = vcmp.eq.s32.totalorder %v1031, 2
        %v1037 = vxor.u32 %v1028, 2147483648
        %v1038 = vsel %vm1036, %v1037, %v1029
        %v1039 = vsel %vm1032, %v1035, %v1038
        %v1040 = vsel %vm1030, nan, %v1039
        %1041 = vst [vmem:[%s149 + $0x8] sm:$0xff] %v731
        %1042 = vst [vmem:[%s149 + $0x18] sm:$0xff] %v834
        %1043 = vst [vmem:[%s149 + $0x28] sm:$0xff] %v937
        %1044 = vst [vmem:[%s149 + $0x38] sm:$0xff] %v1040
        %s1045 = sand.u32 %s71, 1
        %s1046 = scalar_lea.sflag [#allocation3], %s1045
        %s1047 = sand.u32 %s71, 1
        %s1048 = smul.addr %s1047, 64
        %s1049 = scalar_lea.vmem [#allocation2], %s1048
        // Predicated region
        $region29: #{tpu_custom_call.1} parent=27 // pred_check
          %p1050 = pneg %p81
        $region30: #{tpu_custom_call.1} parent=27 // pred_check_branch
          %1052 = sbr.rel (%p1050) target = $region32
        $region31: #{tpu_custom_call.1} parent=27 // pred_region
          %s1053 = smul.u32 4, %s16
          %s1054 = ssub.s32 9, %s1053
          %p1055 = scmp.lt.s32.totalorder %s1054, 4
          %s1056 = scalar_select %p1055, %s1054, 4
          %s1057 = smul.u32 128, %s1056
          %s1058 = smul.u32 %s1057, 2
          %s1060 = ssub.s32 1024, %s1058
          %1061 = vsyncadd %s1046, %s1060
          %p1062 = scmp.ne.s32.totalorder 0, %s1058
          %s1063 = smul.addr %s1053, 2
          %s1064 = smul.addr %s1063, 128
          %s1065 = scalar_lea.hbm %s2, %s1064
          %s1066 = smul.u32 16, %s1056
          %s1067 = sshll.u32 %s1049, 4
          %s1068 = int_to_ptr.vmem [resolvable:$true] %s1067
          %s1069 = sshll.u32 %s1066, 4
          %1073 = dma.vmem_to_hbm [thread:$0]  (%p1062), %s1068, %s1069, %s1065, %s1046, 256, 256, 16
        $region32: #{tpu_custom_call.1} parent=27 // pred_fallthru
          _
      $region28: #{tpu_custom_call.1} parent=5 // pred_fallthru
        _
      %p1074 = scmp.le.s32.totalorder 2, %s11
      // Predicated region
      $region33: #{tpu_custom_call.1} parent=5 // pred_check
        %p1075 = pneg %p1074
      $region34: #{tpu_custom_call.1} parent=5 // pred_check_branch
        %1077 = sbr.rel (%p1075) target = $region36
      $region35: #{tpu_custom_call.1} parent=5 // pred_region
        %s1078 = ssub.s32 %s11, 2
        // Predicated region
        $region37: #{tpu_custom_call.1} parent=35 // pred_check
          %p1079 = pneg %p87
        $region38: #{tpu_custom_call.1} parent=35 // pred_check_branch
          %1081 = sbr.rel (%p1079) target = $region40
        $region39: #{tpu_custom_call.1} parent=35 // pred_region
          %s1082 = sand.u32 %s72, 1
          %s1083 = scalar_lea.sflag [#allocation3], %s1082
          %s1084 = sand.u32 %s72, 1
          %s1085 = smul.addr %s1084, 64
          %s1086 = scalar_lea.vmem [#allocation2], %s1085
          %1087 = dma.done %s1083, 1024
        $region40: #{tpu_custom_call.1} parent=35 // pred_fallthru
          _
      $region36: #{tpu_custom_call.1} parent=5 // pred_fallthru
        _
    $region6: #{tpu_custom_call.1} parent=1 // loop_footer
      %s15 = sadd.s32 1, %s11
    $region7: #{tpu_custom_call.1} parent=1 // loop_footer_branch
      %10 = sbr.rel target = $region3
    $region8: #{tpu_custom_call.1} parent=1 // loop_exit
      _
    %1088 = vsyncpa [#allocation3], 1
    %s1089 = scalar_lea.sflag [#allocation3], 1
    %1090 = vsyncpa %s1089, 1

</llo_original>
